<compile_context>
chip_gen: v5e
topology: v5e:2x2
jax: 0.10.0
libtpu: 0.0.40
codegen_flags: <defaults>
</compile_context>

<pallas_src>
import math

import jax
import jax.numpy as jnp
from jax.experimental import pallas as pl
from jax.experimental.pallas import tpu as pltpu


def _round_up(x, m):
    return ((x + m - 1) // m) * m


def _fused_kernel(spatial_ref, temporal_ref, wt_ref, bt_ref, out_ref):
    # spatial_ref : (tb, S)     streamed batch tile (passthrough)
    # temporal_ref: (tb, T)     streamed batch tile
    # wt_ref      : (T,  A)     resident weight (index_map always (0, 0))
    # bt_ref      : (1,  A)     resident bias
    # out_ref     : (tb, S + A) fused output tile = [spatial | temporal_proj]
    s = spatial_ref.shape[-1]
    out_ref[:, :s] = spatial_ref[...]
    out_ref[:, s:] = (
        jnp.dot(
            temporal_ref[...],
            wt_ref[...],
            preferred_element_type=jnp.float32,
            precision=jax.lax.Precision.HIGHEST,
        )
        + bt_ref[...]
    )


def cross_attention_fusion(spatial, temporal, w_t, b_t, *, block_rows=1024):
    """fused = concat([spatial, temporal @ W_t + b_t], axis=1), one Pallas call."""
    B, S = spatial.shape
    B2, T = temporal.shape
    T2, A = w_t.shape
    assert B == B2 and T == T2
    # The module's bmm(spatial.unsqueeze(1), temporal_proj.unsqueeze(2)) requires this.
    assert S == A, "spatial_dim must equal attention_dim for this module's forward"
    b_t = jnp.reshape(b_t, (1, A)).astype(jnp.float32)  # accept (A,) or (1, A)

    # Batch tile: multiple of 8 sublanes, capped at block_rows, and split so the
    # grid has >=2 steps when B is modest (keeps both v7x TCs busy; harmless on
    # single-TC v5e/v6e).  cdiv grid => no batch padding, ragged last block is
    # handled by Pallas (output window clipped to B).
    tb = min(block_rows, max(8, _round_up(-(-B // 2), 8)))
    grid = (pl.cdiv(B, tb),)

    # Double-buffered VMEM footprint estimate (bytes, f32):
    #   temporal + spatial + output streams (x2 buffers) + resident W_t/b_t (x2).
    vmem_bytes = 4 * (2 * tb * T + 2 * tb * S + 2 * tb * (S + A) + 2 * T * A + 2 * A)
    vmem_limit = min(64 << 20, max(32 << 20, int(1.5 * vmem_bytes)))

    return pl.pallas_call(
        _fused_kernel,
        out_shape=jax.ShapeDtypeStruct((B, S + A), jnp.float32),
        grid_spec=pltpu.PrefetchScalarGridSpec(
            num_scalar_prefetch=0,
            grid=grid,
            in_specs=[
                pl.BlockSpec((tb, S), lambda i: (i, 0)),   # spatial stream
                pl.BlockSpec((tb, T), lambda i: (i, 0)),   # temporal stream
                pl.BlockSpec((T, A), lambda i: (0, 0)),    # W_t resident
                pl.BlockSpec((1, A), lambda i: (0, 0)),    # b_t resident
            ],
            out_specs=pl.BlockSpec((tb, S + A), lambda i: (i, 0)),
        ),
        compiler_params=pltpu.CompilerParams(
            dimension_semantics=("parallel",),  # megacore split on v7x; no-op v5e/v6e
            vmem_limit_bytes=vmem_limit,
        ),
    )(spatial, temporal, w_t, b_t)


def reference(spatial, temporal, w_t, b_t):
    tproj = (
        jnp.dot(temporal, w_t, precision=jax.lax.Precision.HIGHEST)
        + jnp.reshape(b_t, (1, -1))
    )
    scores = jnp.sum(spatial * tproj, axis=-1, keepdims=True)      # (B, 1)
    weights = jax.nn.softmax(scores, axis=-1)                      # size-1 axis -> all ones
    attended = weights * tproj
    return jnp.concatenate([spatial, attended], axis=1)


if __name__ == "__main__":
    # Small shapes consistent with the module (forward requires spatial_dim == attention_dim).
    B, SPATIAL_DIM, TEMPORAL_DIM, ATTENTION_DIM = 16, 128, 256, 128

    key = jax.random.PRNGKey(0)
    k_sp, k_tp, k_wt, k_bt, k_ws, k_bs = jax.random.split(key, 6)

    spatial = jax.random.normal(k_sp, (B, SPATIAL_DIM), dtype=jnp.float32)
    temporal = jax.random.normal(k_tp, (B, TEMPORAL_DIM), dtype=jnp.float32)

    # nn.Linear-style init for temporal_projection (weight stored transposed: (T, A)).
    bound_t = 1.0 / math.sqrt(TEMPORAL_DIM)
    w_t = jax.random.uniform(k_wt, (TEMPORAL_DIM, ATTENTION_DIM),
                             minval=-bound_t, maxval=bound_t, dtype=jnp.float32)
    b_t = jax.random.uniform(k_bt, (ATTENTION_DIM,),
                             minval=-bound_t, maxval=bound_t, dtype=jnp.float32)

    # spatial_projection params (declared in __init__ but unused in forward).
    bound_s = 1.0 / math.sqrt(SPATIAL_DIM)
    _w_s = jax.random.uniform(k_ws, (SPATIAL_DIM, ATTENTION_DIM),
                              minval=-bound_s, maxval=bound_s, dtype=jnp.float32)
    _b_s = jax.random.uniform(k_bs, (ATTENTION_DIM,),
                              minval=-bound_s, maxval=bound_s, dtype=jnp.float32)

    out = cross_attention_fusion(spatial, temporal, w_t, b_t)
    out = jax.block_until_ready(out)

    ref = reference(spatial, temporal, w_t, b_t)
    assert out.shape == (B, SPATIAL_DIM + ATTENTION_DIM)
    assert jnp.allclose(out, ref, atol=1e-4, rtol=1e-4), "mismatch vs reference"

    print("KERNEL_OK")
</pallas_src>

<mosaic_0001>
module attributes {stable_mosaic.version = 11 : i64} {
  func.func @_fused_kernel(%arg0: i32, %arg1: memref<8x128xf32, #tpu.memory_space<vmem>>, %arg2: memref<8x256xf32, #tpu.memory_space<vmem>>, %arg3: memref<256x128xf32, #tpu.memory_space<vmem>>, %arg4: memref<1x128xf32, #tpu.memory_space<vmem>>, %arg5: memref<8x256xf32, #tpu.memory_space<vmem>>) attributes {dimension_semantics = [#tpu.dimension_semantics<parallel>], iteration_bounds = array<i64: 2>, scalar_prefetch = 0 : i64, scratch_operands = 0 : i64, tpu.core_type = #tpu.core_type<tc>, window_params = [{transform_indices = @transform_0, window_bounds = array<i64: 8, 128>}, {transform_indices = @transform_1, window_bounds = array<i64: 8, 256>}, {pipeline_mode = #tpu.pipeline_mode<synchronous>, transform_indices = @transform_2, window_bounds = array<i64: 256, 128>}, {pipeline_mode = #tpu.pipeline_mode<synchronous>, transform_indices = @transform_3, window_bounds = array<i64: 1, 128>}, {transform_indices = @transform_4, window_bounds = array<i64: 8, 256>}]} {
    %c0 = arith.constant 0 : index
    %c0_0 = arith.constant 0 : index
    %0 = vector.load %arg1[%c0, %c0_0] : memref<8x128xf32, #tpu.memory_space<vmem>>, vector<8x128xf32>
    %c0_1 = arith.constant 0 : index
    %c0_2 = arith.constant 0 : index
    %1 = vector.load %arg5[%c0_1, %c0_2] : memref<8x256xf32, #tpu.memory_space<vmem>>, vector<8x128xf32>
    tpu.vector_store %arg5[%c0_1, %c0_2], %0 {strides = array<i32>} : memref<8x256xf32, #tpu.memory_space<vmem>>, vector<8x128xf32>,
    %c0_3 = arith.constant 0 : index
    %c0_4 = arith.constant 0 : index
    %2 = vector.load %arg2[%c0_3, %c0_4] : memref<8x256xf32, #tpu.memory_space<vmem>>, vector<8x256xf32>
    %c0_5 = arith.constant 0 : index
    %c0_6 = arith.constant 0 : index
    %3 = vector.load %arg3[%c0_5, %c0_6] : memref<256x128xf32, #tpu.memory_space<vmem>>, vector<256x128xf32>
    %cst = arith.constant dense<0.000000e+00> : vector<8x128xf32>
    %4 = tpu.matmul %2, %3, %cst {dimension_numbers = #tpu.dot_dimension_numbers<[1], [0], [0], [1], [0, 0, 1, 1], [], []>, precision = #tpu.contract_precision<fp32>} : vector<8x256xf32>, vector<256x128xf32>, vector<8x128xf32> -> vector<8x128xf32>
    %c0_7 = arith.constant 0 : index
    %c0_8 = arith.constant 0 : index
    %5 = vector.load %arg4[%c0_7, %c0_8] : memref<1x128xf32, #tpu.memory_space<vmem>>, vector<1x128xf32>
    %6 = vector.broadcast %5 : vector<1x128xf32> to vector<8x128xf32>
    %7 = arith.addf %4, %6 : vector<8x128xf32>
    %c0_9 = arith.constant 0 : index
    %c128 = arith.constant 128 : index
    %8 = vector.load %arg5[%c0_9, %c128] : memref<8x256xf32, #tpu.memory_space<vmem>>, vector<8x128xf32>
    tpu.vector_store %arg5[%c0_9, %c128], %7 {strides = array<i32>} : memref<8x256xf32, #tpu.memory_space<vmem>>, vector<8x128xf32>,
    return
  }
  func.func @transform_0(%arg0: i32) -> (i32, i32) {
    %c0_i32 = arith.constant 0 : i32
    %c0_i32_0 = arith.constant 0 : i32
    return %arg0, %c0_i32 : i32, i32
  }
  func.func @transform_1(%arg0: i32) -> (i32, i32) {
    %c0_i32 = arith.constant 0 : i32
    %c0_i32_0 = arith.constant 0 : i32
    return %arg0, %c0_i32 : i32, i32
  }
  func.func @transform_2(%arg0: i32) -> (i32, i32) {
    %c0_i32 = arith.constant 0 : i32
    %c0_i32_0 = arith.constant 0 : i32
    %c0_i32_1 = arith.constant 0 : i32
    return %c0_i32, %c0_i32_0 : i32, i32
  }
  func.func @transform_3(%arg0: i32) -> (i32, i32) {
    %c0_i32 = arith.constant 0 : i32
    %c0_i32_0 = arith.constant 0 : i32
    %c0_i32_1 = arith.constant 0 : i32
    return %c0_i32, %c0_i32_0 : i32, i32
  }
  func.func @transform_4(%arg0: i32) -> (i32, i32) {
    %c0_i32 = arith.constant 0 : i32
    %c0_i32_0 = arith.constant 0 : i32
    return %arg0, %c0_i32 : i32, i32
  }
}

</mosaic_0001>

<llo_original>
// kernel: tpu_custom_call.1
$region0: #{tpu_custom_call.1}
  #allocation0 [shape = 'u32[]', space=smem, size = 0x4, offset = 0x4, fixed_abs, tag = 'smem constant byte address 0x4 - core index']
  #allocation1 [shape = 'u32[72,128]{1,0:T(1,128)}', space=vmem, size = 0x9000, scoped, tag = 'internal scratch']
  %s0 = inlined_call_operand.hbm [shape: f32[16,128], index: 0, kind: input, shape index: {}]
  %s1 = inlined_call_operand.hbm [shape: f32[16,256], index: 1, kind: input, shape index: {}]
  %s2 = inlined_call_operand.hbm [shape: f32[256,128], index: 2, kind: input, shape index: {}]
  %s3 = inlined_call_operand.vmem [shape: f32[1,128], index: 3, kind: input, shape index: {}]
  %s4 = inlined_call_operand.hbm [shape: f32[16,256], index: 4, kind: output, shape index: {}]
  %s5 = sld [smem:[#allocation0]]
  $region61: #{tpu_custom_call.1} parent=0
    _
  %s7 = ssub.s32 1, %s5
  %s8 = scalar_select 0, %s7, %s5
  $region1: #{tpu_custom_call.1} parent=0
    #allocation2 [shape = 'u8[8192]{0}', space=vmem, size = 0x2000, scoped, tag = 'input window, operand 0']
    #allocation3 [shape = 's32[2]{0}', space=sflag, size = 0x8, scoped, tag = 'scoped memory for tpu_custom_call.1']
    #allocation4 [shape = 's32[2]{0}', space=sflag, size = 0x8, scoped, tag = 'scoped memory for tpu_custom_call.1']
    #allocation5 [shape = 'u8[16384]{0}', space=vmem, size = 0x4000, scoped, tag = 'input window, operand 1']
    #allocation6 [shape = 's32[2]{0}', space=sflag, size = 0x8, scoped, tag = 'scoped memory for tpu_custom_call.1']
    #allocation7 [shape = 'u8[131072]{0}', space=vmem, size = 0x20000, scoped, tag = 'input window, operand 2, single buffered']
    #allocation8 [shape = 'u8[16384]{0}', space=vmem, size = 0x4000, scoped, tag = 'output window, operand 0']
    %9 = vsyncpa [#allocation3], 0
    %s10 = scalar_lea.sflag [#allocation3], 1
    %11 = vsyncpa %s10, 0
    %12 = vsyncpa [#allocation6], 0
    %s13 = scalar_lea.sflag [#allocation6], 1
    %14 = vsyncpa %s13, 0
    %15 = vsyncpa [#allocation4], 0
    %s16 = scalar_lea.sflag [#allocation4], 1
    %17 = vsyncpa %s16, 0
    loop: start=0, step=1, limit=4
    $region2: #{tpu_custom_call.1} parent=1 // loop_pre_header
      _
    $region3: #{tpu_custom_call.1} parent=1 // loop_header
      %s19 = sphi 0, %s23
      %p20 = scmp.ge.s32.totalorder %s19, 4
      %s29 = sphi 0, %s31
      %s32 = sphi 0, %s29
      %s33 = sphi 0, %s32
      %s49 = sphi 0, %s33
      %s55 = sphi 0, %s57
      %s58 = sphi 0, %s55
      %s59 = sphi 0, %s58
      %s75 = sphi 0, %s59
      %s79 = sphi 0, %s79
      %s81 = sphi 0, %s79
      %s82 = sphi 0, %s81
      %s96 = sphi 0, %s82
      %s100 = sphi 0, %s100
      %s102 = sphi 0, %s100
      %s103 = sphi 0, %s102
      %s117 = sphi 0, %s103
      %s123 = sphi 0, %s125
      %s126 = sphi 0, %s123
      %s127 = sphi 0, %s126
      %s143 = sphi 0, %s127
    $region4: #{tpu_custom_call.1} parent=1 // loop_header_branch
      %22 = sbr.rel (%p20) target = $region8
    $region5: #{tpu_custom_call.1} parent=1 // loop_body
      %s24 = ssub.s32 %s19, 1
      %s25 = ssub.s32 %s19, 2
      %s26 = sadd.s32 %s19, 1
      %s27 = ssub.s32 %s19, %s26
      %p28 = scmp.eq.s32.totalorder %s27, 0
      %s30 = sadd.s32 %s29, 1
      %s31 = scalar_select %p28, %s29, %s30
      %p34 = pneg %p28
      %p35 = scmp.eq.s32.totalorder %s19, 1
      %p36 = por %p34, %p35
      %p37 = scmp.ne.s32.totalorder %s29, %s32
      %p38 = scmp.eq.s32.totalorder %s19, 0
      %p39 = por %p37, %p38
      %p40 = scmp.ne.s32.totalorder %s29, %s32
      %p41 = scmp.eq.s32.totalorder %s24, 1
      %p42 = por %p40, %p41
      %p43 = scmp.ne.s32.totalorder %s32, %s33
      %p44 = scmp.eq.s32.totalorder %s24, 0
      %p45 = por %p43, %p44
      %p46 = scmp.ne.s32.totalorder %s32, %s33
      %p47 = scmp.eq.s32.totalorder %s25, 1
      %p48 = por %p46, %p47
      %p50 = scmp.ne.s32.totalorder %s33, %s49
      %p51 = scmp.eq.s32.totalorder %s25, 0
      %p52 = por %p50, %p51
      %s53 = ssub.s32 %s19, %s26
      %p54 = scmp.eq.s32.totalorder %s53, 0
      %s56 = sadd.s32 %s55, 1
      %s57 = scalar_select %p54, %s55, %s56
      %p60 = pneg %p54
      %p61 = scmp.eq.s32.totalorder %s19, 1
      %p62 = por %p60, %p61
      %p63 = scmp.ne.s32.totalorder %s55, %s58
      %p64 = scmp.eq.s32.totalorder %s19, 0
      %p65 = por %p63, %p64
      %p66 = scmp.ne.s32.totalorder %s55, %s58
      %p67 = scmp.eq.s32.totalorder %s24, 1
      %p68 = por %p66, %p67
      %p69 = scmp.ne.s32.totalorder %s58, %s59
      %p70 = scmp.eq.s32.totalorder %s24, 0
      %p71 = por %p69, %p70
      %p72 = scmp.ne.s32.totalorder %s58, %s59
      %p73 = scmp.eq.s32.totalorder %s25, 1
      %p74 = por %p72, %p73
      %p76 = scmp.ne.s32.totalorder %s59, %s75
      %p77 = scmp.eq.s32.totalorder %s25, 0
      %p78 = por %p76, %p77
      %s80 = sadd.s32 %s79, 1
      %p83 = scmp.eq.s32.totalorder %s19, 1
      %p84 = scmp.ne.s32.totalorder %s79, %s81
      %p85 = scmp.eq.s32.totalorder %s19, 0
      %p86 = por %p84, %p85
      %p87 = scmp.ne.s32.totalorder %s79, %s81
      %p88 = scmp.eq.s32.totalorder %s24, 1
      %p89 = por %p87, %p88
      %p90 = scmp.ne.s32.totalorder %s81, %s82
      %p91 = scmp.eq.s32.totalorder %s24, 0
      %p92 = por %p90, %p91
      %p93 = scmp.ne.s32.totalorder %s81, %s82
      %p94 = scmp.eq.s32.totalorder %s25, 1
      %p95 = por %p93, %p94
      %p97 = scmp.ne.s32.totalorder %s82, %s96
      %p98 = scmp.eq.s32.totalorder %s25, 0
      %p99 = por %p97, %p98
      %s101 = sadd.s32 %s100, 1
      %p104 = scmp.eq.s32.totalorder %s19, 1
      %p105 = scmp.ne.s32.totalorder %s100, %s102
      %p106 = scmp.eq.s32.totalorder %s19, 0
      %p107 = por %p105, %p106
      %p108 = scmp.ne.s32.totalorder %s100, %s102
      %p109 = scmp.eq.s32.totalorder %s24, 1
      %p110 = por %p108, %p109
      %p111 = scmp.ne.s32.totalorder %s102, %s103
      %p112 = scmp.eq.s32.totalorder %s24, 0
      %p113 = por %p111, %p112
      %p114 = scmp.ne.s32.totalorder %s102, %s103
      %p115 = scmp.eq.s32.totalorder %s25, 1
      %p116 = por %p114, %p115
      %p118 = scmp.ne.s32.totalorder %s103, %s117
      %p119 = scmp.eq.s32.totalorder %s25, 0
      %p120 = por %p118, %p119
      %s121 = ssub.s32 %s19, %s26
      %p122 = scmp.eq.s32.totalorder %s121, 0
      %s124 = sadd.s32 %s123, 1
      %s125 = scalar_select %p122, %s123, %s124
      %p128 = pneg %p122
      %p129 = scmp.eq.s32.totalorder %s19, 1
      %p130 = por %p128, %p129
      %p131 = scmp.ne.s32.totalorder %s123, %s126
      %p132 = scmp.eq.s32.totalorder %s19, 0
      %p133 = por %p131, %p132
      %p134 = scmp.ne.s32.totalorder %s123, %s126
      %p135 = scmp.eq.s32.totalorder %s24, 1
      %p136 = por %p134, %p135
      %p137 = scmp.ne.s32.totalorder %s126, %s127
      %p138 = scmp.eq.s32.totalorder %s24, 0
      %p139 = por %p137, %p138
      %p140 = scmp.ne.s32.totalorder %s126, %s127
      %p141 = scmp.eq.s32.totalorder %s25, 1
      %p142 = por %p140, %p141
      %p144 = scmp.ne.s32.totalorder %s127, %s143
      %p145 = scmp.eq.s32.totalorder %s25, 0
      %p146 = por %p144, %p145
      %p147 = scmp.le.s32.totalorder 1, %s19
      %p148 = scmp.lt.s32.totalorder %s19, 3
      %p149 = pnand %p147, %p148
      %p150 = pneg %p149
      // Predicated region
      $region9: #{tpu_custom_call.1} parent=5 // pred_check
        _
      $region10: #{tpu_custom_call.1} parent=5 // pred_check_branch
        %152 = sbr.rel (%p149) target = $region12
      $region11: #{tpu_custom_call.1} parent=5 // pred_region
        %s153 = ssub.s32 %s19, 1
        // Predicated region
        $region13: #{tpu_custom_call.1} parent=11 // pred_check
          %p154 = pneg %p92
        $region14: #{tpu_custom_call.1} parent=11 // pred_check_branch
          %156 = sbr.rel (%p154) target = $region16
        $region15: #{tpu_custom_call.1} parent=11 // pred_region
          %158 = vsyncadd [#allocation6], 0
          %s159 = sshll.u32 %s2, 4
          %s160 = int_to_ptr.hbm [resolvable:$true] %s159
          %s161 = sshll.u32 [#allocation7], 4
          %s162 = int_to_ptr.vmem [resolvable:$true] %s161
          %167 = dma.hbm_to_vmem [thread:$0]  %s160, 4096, %s162, [#allocation6], 128, 128, 8
        $region16: #{tpu_custom_call.1} parent=11 // pred_fallthru
          _
        // Predicated region
        $region17: #{tpu_custom_call.1} parent=11 // pred_check
          %p168 = pneg %p113
        $region18: #{tpu_custom_call.1} parent=11 // pred_check_branch
          %170 = sbr.rel (%p168) target = $region20
        $region19: #{tpu_custom_call.1} parent=11 // pred_region
          _
        $region20: #{tpu_custom_call.1} parent=11 // pred_fallthru
          _
      $region12: #{tpu_custom_call.1} parent=5 // pred_fallthru
        _
      %p171 = scmp.lt.s32.totalorder %s19, 2
      // Predicated region
      $region21: #{tpu_custom_call.1} parent=5 // pred_check
        %p172 = pneg %p171
      $region22: #{tpu_custom_call.1} parent=5 // pred_check_branch
        %174 = sbr.rel (%p172) target = $region24
      $region23: #{tpu_custom_call.1} parent=5 // pred_region
        // Predicated region
        $region25: #{tpu_custom_call.1} parent=23 // pred_check
          %p175 = pneg %p39
        $region26: #{tpu_custom_call.1} parent=23 // pred_check_branch
          %177 = sbr.rel (%p175) target = $region28
        $region27: #{tpu_custom_call.1} parent=23 // pred_region
          %s178 = sand.u32 %s29, 1
          %s179 = scalar_lea.sflag [#allocation3], %s178
          %s180 = sand.u32 %s29, 1
          %s181 = smul.addr %s180, 8
          %s182 = scalar_lea.vmem [#allocation2], %s181
          %184 = vsyncadd %s179, 0
          %s185 = smul.addr %s19, 8
          %s186 = scalar_lea.hbm %s0, %s185
          %s188 = sshll.u32 %s186, 4
          %s189 = int_to_ptr.hbm [resolvable:$true] %s188
          %s190 = sshll.u32 %s182, 4
          %s191 = int_to_ptr.vmem [resolvable:$true] %s190
          %193 = dma.hbm_to_vmem [thread:$0]  %s189, 128, %s191, %s179
        $region28: #{tpu_custom_call.1} parent=23 // pred_fallthru
          _
        // Predicated region
        $region29: #{tpu_custom_call.1} parent=23 // pred_check
          %p194 = pneg %p65
        $region30: #{tpu_custom_call.1} parent=23 // pred_check_branch
          %196 = sbr.rel (%p194) target = $region32
        $region31: #{tpu_custom_call.1} parent=23 // pred_region
          %s197 = sand.u32 %s19, 1
          %s198 = scalar_lea.sflag [#allocation6], %s197
          %s199 = sand.u32 %s55, 1
          %s200 = smul.addr %s199, 16
          %s201 = scalar_lea.vmem [#allocation5], %s200
          %203 = vsyncadd %s198, 0
          %s204 = smul.addr %s19, 2
          %s205 = smul.addr %s204, 8
          %s206 = scalar_lea.hbm %s1, %s205
          %s208 = sshll.u32 %s206, 4
          %s209 = int_to_ptr.hbm [resolvable:$true] %s208
          %s210 = sshll.u32 %s201, 4
          %s211 = int_to_ptr.vmem [resolvable:$true] %s210
          %213 = dma.hbm_to_vmem [thread:$0]  %s209, 256, %s211, %s198
        $region32: #{tpu_custom_call.1} parent=23 // pred_fallthru
          _
      $region24: #{tpu_custom_call.1} parent=5 // pred_fallthru
        _
      %p214 = scmp.le.s32.totalorder 1, %s19
      %p215 = scmp.lt.s32.totalorder %s19, 3
      %p216 = pnand %p214, %p215
      %p217 = pneg %p216
      // Predicated region
      $region33: #{tpu_custom_call.1} parent=5 // pred_check
        _
      $region34: #{tpu_custom_call.1} parent=5 // pred_check_branch
        %219 = sbr.rel (%p216) target = $region36
      $region35: #{tpu_custom_call.1} parent=5 // pred_region
        %s220 = ssub.s32 %s19, 1
        %s221 = sand.u32 %s32, 1
        %s222 = scalar_lea.sflag [#allocation3], %s221
        %s223 = sand.u32 %s32, 1
        %s224 = smul.addr %s223, 8
        %s225 = scalar_lea.vmem [#allocation2], %s224
        // Predicated region
        $region37: #{tpu_custom_call.1} parent=35 // pred_check
          %p226 = pneg %p45
        $region38: #{tpu_custom_call.1} parent=35 // pred_check_branch
          %228 = sbr.rel (%p226) target = $region40
        $region39: #{tpu_custom_call.1} parent=35 // pred_region
          %230 = dma.done %s222, 128
        $region40: #{tpu_custom_call.1} parent=35 // pred_fallthru
          _
        %s231 = sand.u32 %s24, 1
        %s232 = scalar_lea.sflag [#allocation6], %s231
        %s233 = sand.u32 %s58, 1
        %s234 = smul.addr %s233, 16
        %s235 = scalar_lea.vmem [#allocation5], %s234
        // Predicated region
        $region41: #{tpu_custom_call.1} parent=35 // pred_check
          %p236 = pneg %p71
        $region42: #{tpu_custom_call.1} parent=35 // pred_check_branch
          %238 = sbr.rel (%p236) target = $region44
        $region43: #{tpu_custom_call.1} parent=35 // pred_region
          %240 = dma.done %s232, 256
        $region44: #{tpu_custom_call.1} parent=35 // pred_fallthru
          _
        // Predicated region
        $region45: #{tpu_custom_call.1} parent=35 // pred_check
          %p241 = pneg %p92
        $region46: #{tpu_custom_call.1} parent=35 // pred_check_branch
          %243 = sbr.rel (%p241) target = $region48
        $region47: #{tpu_custom_call.1} parent=35 // pred_region
          %245 = dma.done [#allocation6], 4096
        $region48: #{tpu_custom_call.1} parent=35 // pred_fallthru
          _
        %s246 = sand.u32 %s32, 1
        %s247 = scalar_lea.sflag [#allocation3], %s246
        %s248 = sand.u32 %s32, 1
        %s249 = smul.addr %s248, 8
        %s250 = scalar_lea.vmem [#allocation2], %s249
        %p251 = pneg %p45
        %p252 = pneg %p42
        %s253 = sand.u32 %s24, 1
        %s254 = scalar_lea.sflag [#allocation6], %s253
        %s255 = sand.u32 %s58, 1
        %s256 = smul.addr %s255, 16
        %s257 = scalar_lea.vmem [#allocation5], %s256
        %p258 = pneg %p71
        %p259 = pneg %p68
        %p260 = pneg %p92
        %p261 = pneg %p89
        %p262 = pneg %p113
        %p263 = pneg %p110
        %p264 = pneg %p139
        %p265 = pneg %p136
        %s266 = sand.u32 %s126, 1
        %s267 = scalar_lea.sflag [#allocation4], %s266
        %s268 = sand.u32 %s126, 1
        %s269 = smul.addr %s268, 16
        %s270 = scalar_lea.vmem [#allocation8], %s269
        %v271 = vld [vmem:[%s225] sm:$0xff]
        %272 = vst [vmem:[%s270] sm:$0xff] %v271
        %v273 = vld [vmem:[%s235] sm:$0xff]
        %v274 = vld [vmem:[%s235 + $0x8] sm:$0xff]
        %v275 = vld [vmem:[#allocation7] sm:$0xff]
        %v276 = vld [vmem:[#allocation7 + $0x8] sm:$0xff]
        %v277 = vld [vmem:[#allocation7 + $0x10] sm:$0xff]
        %v278 = vld [vmem:[#allocation7 + $0x18] sm:$0xff]
        %v279 = vld [vmem:[#allocation7 + $0x20] sm:$0xff]
        %v280 = vld [vmem:[#allocation7 + $0x28] sm:$0xff]
        %v281 = vld [vmem:[#allocation7 + $0x30] sm:$0xff]
        %v282 = vld [vmem:[#allocation7 + $0x38] sm:$0xff]
        %v283 = vld [vmem:[#allocation7 + $0x40] sm:$0xff]
        %v284 = vld [vmem:[#allocation7 + $0x48] sm:$0xff]
        %v285 = vld [vmem:[#allocation7 + $0x50] sm:$0xff]
        %v286 = vld [vmem:[#allocation7 + $0x58] sm:$0xff]
        %v287 = vld [vmem:[#allocation7 + $0x60] sm:$0xff]
        %v288 = vld [vmem:[#allocation7 + $0x68] sm:$0xff]
        %v289 = vld [vmem:[#allocation7 + $0x70] sm:$0xff]
        %v290 = vld [vmem:[#allocation7 + $0x78] sm:$0xff]
        %v291 = vld [vmem:[#allocation7 + $0x80] sm:$0xff]
        %v292 = vld [vmem:[#allocation7 + $0x88] sm:$0xff]
        %v293 = vld [vmem:[#allocation7 + $0x90] sm:$0xff]
        %v294 = vld [vmem:[#allocation7 + $0x98] sm:$0xff]
        %v295 = vld [vmem:[#allocation7 + $0xa0] sm:$0xff]
        %v296 = vld [vmem:[#allocation7 + $0xa8] sm:$0xff]
        %v297 = vld [vmem:[#allocation7 + $0xb0] sm:$0xff]
        %v298 = vld [vmem:[#allocation7 + $0xb8] sm:$0xff]
        %v299 = vld [vmem:[#allocation7 + $0xc0] sm:$0xff]
        %v300 = vld [vmem:[#allocation7 + $0xc8] sm:$0xff]
        %v301 = vld [vmem:[#allocation7 + $0xd0] sm:$0xff]
        %v302 = vld [vmem:[#allocation7 + $0xd8] sm:$0xff]
        %v303 = vld [vmem:[#allocation7 + $0xe0] sm:$0xff]
        %v304 = vld [vmem:[#allocation7 + $0xe8] sm:$0xff]
        %v305 = vld [vmem:[#allocation7 + $0xf0] sm:$0xff]
        %v306 = vld [vmem:[#allocation7 + $0xf8] sm:$0xff]
        %v307 = vld [vmem:[%s3] sm:$0x1]
        %v309 = vperm.slane %v307, 0
        %v311 = vand.u32 %v290, 4294901760
        %312 = vmatpush.msra.mxu0 %v311
        %v313 = vand.u32 %v289, 4294901760
        %314 = vmatpush.msra.mxu0 %v313
        %v315 = vand.u32 %v288, 4294901760
        %316 = vmatpush.msra.mxu0 %v315
        %v317 = vand.u32 %v287, 4294901760
        %318 = vmatpush.msra.mxu0 %v317
        %v319 = vand.u32 %v286, 4294901760
        %320 = vmatpush.msra.mxu0 %v319
        %v321 = vand.u32 %v285, 4294901760
        %322 = vmatpush.msra.mxu0 %v321
        %v323 = vand.u32 %v284, 4294901760
        %324 = vmatpush.msra.mxu0 %v323
        %v325 = vand.u32 %v283, 4294901760
        %326 = vmatpush.msra.mxu0 %v325
        %v327 = vand.u32 %v282, 4294901760
        %328 = vmatpush.msra.mxu0 %v327
        %v329 = vand.u32 %v281, 4294901760
        %330 = vmatpush.msra.mxu0 %v329
        %v331 = vand.u32 %v280, 4294901760
        %332 = vmatpush.msra.mxu0 %v331
        %v333 = vand.u32 %v279, 4294901760
        %334 = vmatpush.msra.mxu0 %v333
        %v335 = vand.u32 %v278, 4294901760
        %336 = vmatpush.msra.mxu0 %v335
        %v337 = vand.u32 %v277, 4294901760
        %338 = vmatpush.msra.mxu0 %v337
        %v339 = vand.u32 %v276, 4294901760
        %340 = vmatpush.msra.mxu0 %v339
        %v341 = vand.u32 %v275, 4294901760
        %342 = vmatpush.msra.mxu0 %v341
        %v343 = vand.u32 %v273, 4294901760
        %v344 = vsub.f32 %v273, %v343
        %v345 = vand.u32 %v344, 4294901760
        %v346 = vsub.f32 %v344, %v345
        %v347 = vand.u32 %v346, 4294901760
        %348 = vmatmul.f32.gmra.mxu0 %v347
        %v349 = vpop.f32.mrf.mxu0
        %v350 = vadd.f32 %v309, %v349
        %351 = vdwg.mxu0
        %v352 = vand.u32 %v290, 4294901760
        %v353 = vsub.f32 %v290, %v352
        %v354 = vand.u32 %v353, 4294901760
        %v355 = vsub.f32 %v353, %v354
        %v356 = vand.u32 %v355, 4294901760
        %357 = vmatpush.msra.mxu0 %v356
        %v358 = vand.u32 %v289, 4294901760
        %v359 = vsub.f32 %v289, %v358
        %v360 = vand.u32 %v359, 4294901760
        %v361 = vsub.f32 %v359, %v360
        %v362 = vand.u32 %v361, 4294901760
        %363 = vmatpush.msra.mxu0 %v362
        %v364 = vand.u32 %v288, 4294901760
        %v365 = vsub.f32 %v288, %v364
        %v366 = vand.u32 %v365, 4294901760
        %v367 = vsub.f32 %v365, %v366
        %v368 = vand.u32 %v367, 4294901760
        %369 = vmatpush.msra.mxu0 %v368
        %v370 = vand.u32 %v287, 4294901760
        %v371 = vsub.f32 %v287, %v370
        %v372 = vand.u32 %v371, 4294901760
        %v373 = vsub.f32 %v371, %v372
        %v374 = vand.u32 %v373, 4294901760
        %375 = vmatpush.msra.mxu0 %v374
        %v376 = vand.u32 %v286, 4294901760
        %v377 = vsub.f32 %v286, %v376
        %v378 = vand.u32 %v377, 4294901760
        %v379 = vsub.f32 %v377, %v378
        %v380 = vand.u32 %v379, 4294901760
        %381 = vmatpush.msra.mxu0 %v380
        %v382 = vand.u32 %v285, 4294901760
        %v383 = vsub.f32 %v285, %v382
        %v384 = vand.u32 %v383, 4294901760
        %v385 = vsub.f32 %v383, %v384
        %v386 = vand.u32 %v385, 4294901760
        %387 = vmatpush.msra.mxu0 %v386
        %v388 = vand.u32 %v284, 4294901760
        %v389 = vsub.f32 %v284, %v388
        %v390 = vand.u32 %v389, 4294901760
        %v391 = vsub.f32 %v389, %v390
        %v392 = vand.u32 %v391, 4294901760
        %393 = vmatpush.msra.mxu0 %v392
        %v394 = vand.u32 %v283, 4294901760
        %v395 = vsub.f32 %v283, %v394
        %v396 = vand.u32 %v395, 4294901760
        %v397 = vsub.f32 %v395, %v396
        %v398 = vand.u32 %v397, 4294901760
        %399 = vmatpush.msra.mxu0 %v398
        %v400 = vand.u32 %v282, 4294901760
        %v401 = vsub.f32 %v282, %v400
        %v402 = vand.u32 %v401, 4294901760
        %v403 = vsub.f32 %v401, %v402
        %v404 = vand.u32 %v403, 4294901760
        %405 = vmatpush.msra.mxu0 %v404
        %v406 = vand.u32 %v281, 4294901760
        %v407 = vsub.f32 %v281, %v406
        %v408 = vand.u32 %v407, 4294901760
        %v409 = vsub.f32 %v407, %v408
        %v410 = vand.u32 %v409, 4294901760
        %411 = vmatpush.msra.mxu0 %v410
        %v412 = vand.u32 %v280, 4294901760
        %v413 = vsub.f32 %v280, %v412
        %v414 = vand.u32 %v413, 4294901760
        %v415 = vsub.f32 %v413, %v414
        %v416 = vand.u32 %v415, 4294901760
        %417 = vmatpush.msra.mxu0 %v416
        %v418 = vand.u32 %v279, 4294901760
        %v419 = vsub.f32 %v279, %v418
        %v420 = vand.u32 %v419, 4294901760
        %v421 = vsub.f32 %v419, %v420
        %v422 = vand.u32 %v421, 4294901760
        %423 = vmatpush.msra.mxu0 %v422
        %v424 = vand.u32 %v278, 4294901760
        %v425 = vsub.f32 %v278, %v424
        %v426 = vand.u32 %v425, 4294901760
        %v427 = vsub.f32 %v425, %v426
        %v428 = vand.u32 %v427, 4294901760
        %429 = vmatpush.msra.mxu0 %v428
        %v430 = vand.u32 %v277, 4294901760
        %v431 = vsub.f32 %v277, %v430
        %v432 = vand.u32 %v431, 4294901760
        %v433 = vsub.f32 %v431, %v432
        %v434 = vand.u32 %v433, 4294901760
        %435 = vmatpush.msra.mxu0 %v434
        %v436 = vand.u32 %v276, 4294901760
        %v437 = vsub.f32 %v276, %v436
        %v438 = vand.u32 %v437, 4294901760
        %v439 = vsub.f32 %v437, %v438
        %v440 = vand.u32 %v439, 4294901760
        %441 = vmatpush.msra.mxu0 %v440
        %v442 = vand.u32 %v275, 4294901760
        %v443 = vsub.f32 %v275, %v442
        %v444 = vand.u32 %v443, 4294901760
        %v445 = vsub.f32 %v443, %v444
        %v446 = vand.u32 %v445, 4294901760
        %447 = vmatpush.msra.mxu0 %v446
        %v448 = vand.u32 %v273, 4294901760
        %449 = vmatmul.f32.gmra.mxu0 %v448
        %v450 = vpop.f32.mrf.mxu0
        %v451 = vadd.f32 %v350, %v450
        %452 = vdwg.mxu0
        %v453 = vand.u32 %v290, 4294901760
        %v454 = vsub.f32 %v290, %v453
        %455 = vmatpush.msra.mxu0 %v454
        %v456 = vand.u32 %v289, 4294901760
        %v457 = vsub.f32 %v289, %v456
        %458 = vmatpush.msra.mxu0 %v457
        %v459 = vand.u32 %v288, 4294901760
        %v460 = vsub.f32 %v288, %v459
        %461 = vmatpush.msra.mxu0 %v460
        %v462 = vand.u32 %v287, 4294901760
        %v463 = vsub.f32 %v287, %v462
        %464 = vmatpush.msra.mxu0 %v463
        %v465 = vand.u32 %v286, 4294901760
        %v466 = vsub.f32 %v286, %v465
        %467 = vmatpush.msra.mxu0 %v466
        %v468 = vand.u32 %v285, 4294901760
        %v469 = vsub.f32 %v285, %v468
        %470 = vmatpush.msra.mxu0 %v469
        %v471 = vand.u32 %v284, 4294901760
        %v472 = vsub.f32 %v284, %v471
        %473 = vmatpush.msra.mxu0 %v472
        %v474 = vand.u32 %v283, 4294901760
        %v475 = vsub.f32 %v283, %v474
        %476 = vmatpush.msra.mxu0 %v475
        %v477 = vand.u32 %v282, 4294901760
        %v478 = vsub.f32 %v282, %v477
        %479 = vmatpush.msra.mxu0 %v478
        %v480 = vand.u32 %v281, 4294901760
        %v481 = vsub.f32 %v281, %v480
        %482 = vmatpush.msra.mxu0 %v481
        %v483 = vand.u32 %v280, 4294901760
        %v484 = vsub.f32 %v280, %v483
        %485 = vmatpush.msra.mxu0 %v484
        %v486 = vand.u32 %v279, 4294901760
        %v487 = vsub.f32 %v279, %v486
        %488 = vmatpush.msra.mxu0 %v487
        %v489 = vand.u32 %v278, 4294901760
        %v490 = vsub.f32 %v278, %v489
        %491 = vmatpush.msra.mxu0 %v490
        %v492 = vand.u32 %v277, 4294901760
        %v493 = vsub.f32 %v277, %v492
        %494 = vmatpush.msra.mxu0 %v493
        %v495 = vand.u32 %v276, 4294901760
        %v496 = vsub.f32 %v276, %v495
        %497 = vmatpush.msra.mxu0 %v496
        %v498 = vand.u32 %v275, 4294901760
        %v499 = vsub.f32 %v275, %v498
        %500 = vmatpush.msra.mxu0 %v499
        %v501 = vand.u32 %v273, 4294901760
        %v502 = vsub.f32 %v273, %v501
        %503 = vmatmul.f32.gmra.mxu0 %v502
        %v504 = vpop.f32.mrf.mxu0
        %v505 = vadd.f32 %v451, %v504
        %506 = vdwg.mxu0
        %v507 = vand.u32 %v290, 4294901760
        %508 = vmatpush.msra.mxu0 %v507
        %v509 = vand.u32 %v289, 4294901760
        %510 = vmatpush.msra.mxu0 %v509
        %v511 = vand.u32 %v288, 4294901760
        %512 = vmatpush.msra.mxu0 %v511
        %v513 = vand.u32 %v287, 4294901760
        %514 = vmatpush.msra.mxu0 %v513
        %v515 = vand.u32 %v286, 4294901760
        %516 = vmatpush.msra.mxu0 %v515
        %v517 = vand.u32 %v285, 4294901760
        %518 = vmatpush.msra.mxu0 %v517
        %v519 = vand.u32 %v284, 4294901760
        %520 = vmatpush.msra.mxu0 %v519
        %v521 = vand.u32 %v283, 4294901760
        %522 = vmatpush.msra.mxu0 %v521
        %v523 = vand.u32 %v282, 4294901760
        %524 = vmatpush.msra.mxu0 %v523
        %v525 = vand.u32 %v281, 4294901760
        %526 = vmatpush.msra.mxu0 %v525
        %v527 = vand.u32 %v280, 4294901760
        %528 = vmatpush.msra.mxu0 %v527
        %v529 = vand.u32 %v279, 4294901760
        %530 = vmatpush.msra.mxu0 %v529
        %v531 = vand.u32 %v278, 4294901760
        %532 = vmatpush.msra.mxu0 %v531
        %v533 = vand.u32 %v277, 4294901760
        %534 = vmatpush.msra.mxu0 %v533
        %v535 = vand.u32 %v276, 4294901760
        %536 = vmatpush.msra.mxu0 %v535
        %v537 = vand.u32 %v275, 4294901760
        %538 = vmatpush.msra.mxu0 %v537
        %v539 = vand.u32 %v273, 4294901760
        %v540 = vsub.f32 %v273, %v539
        %v541 = vand.u32 %v540, 4294901760
        %542 = vmatmul.f32.gmra.mxu0 %v541
        %v543 = vpop.f32.mrf.mxu0
        %v544 = vadd.f32 %v505, %v543
        %545 = vdwg.mxu0
        %v546 = vand.u32 %v290, 4294901760
        %v547 = vsub.f32 %v290, %v546
        %v548 = vand.u32 %v547, 4294901760
        %549 = vmatpush.msra.mxu0 %v548
        %v550 = vand.u32 %v289, 4294901760
        %v551 = vsub.f32 %v289, %v550
        %v552 = vand.u32 %v551, 4294901760
        %553 = vmatpush.msra.mxu0 %v552
        %v554 = vand.u32 %v288, 4294901760
        %v555 = vsub.f32 %v288, %v554
        %v556 = vand.u32 %v555, 4294901760
        %557 = vmatpush.msra.mxu0 %v556
        %v558 = vand.u32 %v287, 4294901760
        %v559 = vsub.f32 %v287, %v558
        %v560 = vand.u32 %v559, 4294901760
        %561 = vmatpush.msra.mxu0 %v560
        %v562 = vand.u32 %v286, 4294901760
        %v563 = vsub.f32 %v286, %v562
        %v564 = vand.u32 %v563, 4294901760
        %565 = vmatpush.msra.mxu0 %v564
        %v566 = vand.u32 %v285, 4294901760
        %v567 = vsub.f32 %v285, %v566
        %v568 = vand.u32 %v567, 4294901760
        %569 = vmatpush.msra.mxu0 %v568
        %v570 = vand.u32 %v284, 4294901760
        %v571 = vsub.f32 %v284, %v570
        %v572 = vand.u32 %v571, 4294901760
        %573 = vmatpush.msra.mxu0 %v572
        %v574 = vand.u32 %v283, 4294901760
        %v575 = vsub.f32 %v283, %v574
        %v576 = vand.u32 %v575, 4294901760
        %577 = vmatpush.msra.mxu0 %v576
        %v578 = vand.u32 %v282, 4294901760
        %v579 = vsub.f32 %v282, %v578
        %v580 = vand.u32 %v579, 4294901760
        %581 = vmatpush.msra.mxu0 %v580
        %v582 = vand.u32 %v281, 4294901760
        %v583 = vsub.f32 %v281, %v582
        %v584 = vand.u32 %v583, 4294901760
        %585 = vmatpush.msra.mxu0 %v584
        %v586 = vand.u32 %v280, 4294901760
        %v587 = vsub.f32 %v280, %v586
        %v588 = vand.u32 %v587, 4294901760
        %589 = vmatpush.msra.mxu0 %v588
        %v590 = vand.u32 %v279, 4294901760
        %v591 = vsub.f32 %v279, %v590
        %v592 = vand.u32 %v591, 4294901760
        %593 = vmatpush.msra.mxu0 %v592
        %v594 = vand.u32 %v278, 4294901760
        %v595 = vsub.f32 %v278, %v594
        %v596 = vand.u32 %v595, 4294901760
        %597 = vmatpush.msra.mxu0 %v596
        %v598 = vand.u32 %v277, 4294901760
        %v599 = vsub.f32 %v277, %v598
        %v600 = vand.u32 %v599, 4294901760
        %601 = vmatpush.msra.mxu0 %v600
        %v602 = vand.u32 %v276, 4294901760
        %v603 = vsub.f32 %v276, %v602
        %v604 = vand.u32 %v603, 4294901760
        %605 = vmatpush.msra.mxu0 %v604
        %v606 = vand.u32 %v275, 4294901760
        %v607 = vsub.f32 %v275, %v606
        %v608 = vand.u32 %v607, 4294901760
        %609 = vmatpush.msra.mxu0 %v608
        %v610 = vand.u32 %v273, 4294901760
        %611 = vmatmul.f32.gmra.mxu0 %v610
        %v612 = vpop.f32.mrf.mxu0
        %v613 = vadd.f32 %v544, %v612
        %614 = vdwg.mxu0
        %v615 = vand.u32 %v290, 4294901760
        %616 = vmatpush.msra.mxu0 %v615
        %v617 = vand.u32 %v289, 4294901760
        %618 = vmatpush.msra.mxu0 %v617
        %v619 = vand.u32 %v288, 4294901760
        %620 = vmatpush.msra.mxu0 %v619
        %v621 = vand.u32 %v287, 4294901760
        %622 = vmatpush.msra.mxu0 %v621
        %v623 = vand.u32 %v286, 4294901760
        %624 = vmatpush.msra.mxu0 %v623
        %v625 = vand.u32 %v285, 4294901760
        %626 = vmatpush.msra.mxu0 %v625
        %v627 = vand.u32 %v284, 4294901760
        %628 = vmatpush.msra.mxu0 %v627
        %v629 = vand.u32 %v283, 4294901760
        %630 = vmatpush.msra.mxu0 %v629
        %v631 = vand.u32 %v282, 4294901760
        %632 = vmatpush.msra.mxu0 %v631
        %v633 = vand.u32 %v281, 4294901760
        %634 = vmatpush.msra.mxu0 %v633
        %v635 = vand.u32 %v280, 4294901760
        %636 = vmatpush.msra.mxu0 %v635
        %v637 = vand.u32 %v279, 4294901760
        %638 = vmatpush.msra.mxu0 %v637
        %v639 = vand.u32 %v278, 4294901760
        %640 = vmatpush.msra.mxu0 %v639
        %v641 = vand.u32 %v277, 4294901760
        %642 = vmatpush.msra.mxu0 %v641
        %v643 = vand.u32 %v276, 4294901760
        %644 = vmatpush.msra.mxu0 %v643
        %v645 = vand.u32 %v275, 4294901760
        %646 = vmatpush.msra.mxu0 %v645
        %v647 = vand.u32 %v273, 4294901760
        %648 = vmatmul.f32.gmra.mxu0 %v647
        %v649 = vpop.f32.mrf.mxu0
        %v650 = vadd.f32 %v613, %v649
        %651 = vdwg.mxu0
        %v652 = vand.u32 %v306, 4294901760
        %653 = vmatpush.msra.mxu0 %v652
        %v654 = vand.u32 %v305, 4294901760
        %655 = vmatpush.msra.mxu0 %v654
        %v656 = vand.u32 %v304, 4294901760
        %657 = vmatpush.msra.mxu0 %v656
        %v658 = vand.u32 %v303, 4294901760
        %659 = vmatpush.msra.mxu0 %v658
        %v660 = vand.u32 %v302, 4294901760
        %661 = vmatpush.msra.mxu0 %v660
        %v662 = vand.u32 %v301, 4294901760
        %663 = vmatpush.msra.mxu0 %v662
        %v664 = vand.u32 %v300, 4294901760
        %665 = vmatpush.msra.mxu0 %v664
        %v666 = vand.u32 %v299, 4294901760
        %667 = vmatpush.msra.mxu0 %v666
        %v668 = vand.u32 %v298, 4294901760
        %669 = vmatpush.msra.mxu0 %v668
        %v670 = vand.u32 %v297, 4294901760
        %671 = vmatpush.msra.mxu0 %v670
        %v672 = vand.u32 %v296, 4294901760
        %673 = vmatpush.msra.mxu0 %v672
        %v674 = vand.u32 %v295, 4294901760
        %675 = vmatpush.msra.mxu0 %v674
        %v676 = vand.u32 %v294, 4294901760
        %677 = vmatpush.msra.mxu0 %v676
        %v678 = vand.u32 %v293, 4294901760
        %679 = vmatpush.msra.mxu0 %v678
        %v680 = vand.u32 %v292, 4294901760
        %681 = vmatpush.msra.mxu0 %v680
        %v682 = vand.u32 %v291, 4294901760
        %683 = vmatpush.msra.mxu0 %v682
        %v684 = vand.u32 %v274, 4294901760
        %v685 = vsub.f32 %v274, %v684
        %v686 = vand.u32 %v685, 4294901760
        %v687 = vsub.f32 %v685, %v686
        %v688 = vand.u32 %v687, 4294901760
        %689 = vmatmul.f32.gmra.mxu0 %v688
        %v690 = vpop.f32.mrf.mxu0
        %v691 = vadd.f32 %v650, %v690
        %692 = vdwg.mxu0
        %v693 = vand.u32 %v306, 4294901760
        %v694 = vsub.f32 %v306, %v693
        %v695 = vand.u32 %v694, 4294901760
        %v696 = vsub.f32 %v694, %v695
        %v697 = vand.u32 %v696, 4294901760
        %698 = vmatpush.msra.mxu0 %v697
        %v699 = vand.u32 %v305, 4294901760
        %v700 = vsub.f32 %v305, %v699
        %v701 = vand.u32 %v700, 4294901760
        %v702 = vsub.f32 %v700, %v701
        %v703 = vand.u32 %v702, 4294901760
        %704 = vmatpush.msra.mxu0 %v703
        %v705 = vand.u32 %v304, 4294901760
        %v706 = vsub.f32 %v304, %v705
        %v707 = vand.u32 %v706, 4294901760
        %v708 = vsub.f32 %v706, %v707
        %v709 = vand.u32 %v708, 4294901760
        %710 = vmatpush.msra.mxu0 %v709
        %v711 = vand.u32 %v303, 4294901760
        %v712 = vsub.f32 %v303, %v711
        %v713 = vand.u32 %v712, 4294901760
        %v714 = vsub.f32 %v712, %v713
        %v715 = vand.u32 %v714, 4294901760
        %716 = vmatpush.msra.mxu0 %v715
        %v717 = vand.u32 %v302, 4294901760
        %v718 = vsub.f32 %v302, %v717
        %v719 = vand.u32 %v718, 4294901760
        %v720 = vsub.f32 %v718, %v719
        %v721 = vand.u32 %v720, 4294901760
        %722 = vmatpush.msra.mxu0 %v721
        %v723 = vand.u32 %v301, 4294901760
        %v724 = vsub.f32 %v301, %v723
        %v725 = vand.u32 %v724, 4294901760
        %v726 = vsub.f32 %v724, %v725
        %v727 = vand.u32 %v726, 4294901760
        %728 = vmatpush.msra.mxu0 %v727
        %v729 = vand.u32 %v300, 4294901760
        %v730 = vsub.f32 %v300, %v729
        %v731 = vand.u32 %v730, 4294901760
        %v732 = vsub.f32 %v730, %v731
        %v733 = vand.u32 %v732, 4294901760
        %734 = vmatpush.msra.mxu0 %v733
        %v735 = vand.u32 %v299, 4294901760
        %v736 = vsub.f32 %v299, %v735
        %v737 = vand.u32 %v736, 4294901760
        %v738 = vsub.f32 %v736, %v737
        %v739 = vand.u32 %v738, 4294901760
        %740 = vmatpush.msra.mxu0 %v739
        %v741 = vand.u32 %v298, 4294901760
        %v742 = vsub.f32 %v298, %v741
        %v743 = vand.u32 %v742, 4294901760
        %v744 = vsub.f32 %v742, %v743
        %v745 = vand.u32 %v744, 4294901760
        %746 = vmatpush.msra.mxu0 %v745
        %v747 = vand.u32 %v297, 4294901760
        %v748 = vsub.f32 %v297, %v747
        %v749 = vand.u32 %v748, 4294901760
        %v750 = vsub.f32 %v748, %v749
        %v751 = vand.u32 %v750, 4294901760
        %752 = vmatpush.msra.mxu0 %v751
        %v753 = vand.u32 %v296, 4294901760
        %v754 = vsub.f32 %v296, %v753
        %v755 = vand.u32 %v754, 4294901760
        %v756 = vsub.f32 %v754, %v755
        %v757 = vand.u32 %v756, 4294901760
        %758 = vmatpush.msra.mxu0 %v757
        %v759 = vand.u32 %v295, 4294901760
        %v760 = vsub.f32 %v295, %v759
        %v761 = vand.u32 %v760, 4294901760
        %v762 = vsub.f32 %v760, %v761
        %v763 = vand.u32 %v762, 4294901760
        %764 = vmatpush.msra.mxu0 %v763
        %v765 = vand.u32 %v294, 4294901760
        %v766 = vsub.f32 %v294, %v765
        %v767 = vand.u32 %v766, 4294901760
        %v768 = vsub.f32 %v766, %v767
        %v769 = vand.u32 %v768, 4294901760
        %770 = vmatpush.msra.mxu0 %v769
        %v771 = vand.u32 %v293, 4294901760
        %v772 = vsub.f32 %v293, %v771
        %v773 = vand.u32 %v772, 4294901760
        %v774 = vsub.f32 %v772, %v773
        %v775 = vand.u32 %v774, 4294901760
        %776 = vmatpush.msra.mxu0 %v775
        %v777 = vand.u32 %v292, 4294901760
        %v778 = vsub.f32 %v292, %v777
        %v779 = vand.u32 %v778, 4294901760
        %v780 = vsub.f32 %v778, %v779
        %v781 = vand.u32 %v780, 4294901760
        %782 = vmatpush.msra.mxu0 %v781
        %v783 = vand.u32 %v291, 4294901760
        %v784 = vsub.f32 %v291, %v783
        %v785 = vand.u32 %v784, 4294901760
        %v786 = vsub.f32 %v784, %v785
        %v787 = vand.u32 %v786, 4294901760
        %788 = vmatpush.msra.mxu0 %v787
        %v789 = vand.u32 %v274, 4294901760
        %790 = vmatmul.f32.gmra.mxu0 %v789
        %v791 = vpop.f32.mrf.mxu0
        %v792 = vadd.f32 %v691, %v791
        %793 = vdwg.mxu0
        %v794 = vand.u32 %v306, 4294901760
        %v795 = vsub.f32 %v306, %v794
        %796 = vmatpush.msra.mxu0 %v795
        %v797 = vand.u32 %v305, 4294901760
        %v798 = vsub.f32 %v305, %v797
        %799 = vmatpush.msra.mxu0 %v798
        %v800 = vand.u32 %v304, 4294901760
        %v801 = vsub.f32 %v304, %v800
        %802 = vmatpush.msra.mxu0 %v801
        %v803 = vand.u32 %v303, 4294901760
        %v804 = vsub.f32 %v303, %v803
        %805 = vmatpush.msra.mxu0 %v804
        %v806 = vand.u32 %v302, 4294901760
        %v807 = vsub.f32 %v302, %v806
        %808 = vmatpush.msra.mxu0 %v807
        %v809 = vand.u32 %v301, 4294901760
        %v810 = vsub.f32 %v301, %v809
        %811 = vmatpush.msra.mxu0 %v810
        %v812 = vand.u32 %v300, 4294901760
        %v813 = vsub.f32 %v300, %v812
        %814 = vmatpush.msra.mxu0 %v813
        %v815 = vand.u32 %v299, 4294901760
        %v816 = vsub.f32 %v299, %v815
        %817 = vmatpush.msra.mxu0 %v816
        %v818 = vand.u32 %v298, 4294901760
        %v819 = vsub.f32 %v298, %v818
        %820 = vmatpush.msra.mxu0 %v819
        %v821 = vand.u32 %v297, 4294901760
        %v822 = vsub.f32 %v297, %v821
        %823 = vmatpush.msra.mxu0 %v822
        %v824 = vand.u32 %v296, 4294901760
        %v825 = vsub.f32 %v296, %v824
        %826 = vmatpush.msra.mxu0 %v825
        %v827 = vand.u32 %v295, 4294901760
        %v828 = vsub.f32 %v295, %v827
        %829 = vmatpush.msra.mxu0 %v828
        %v830 = vand.u32 %v294, 4294901760
        %v831 = vsub.f32 %v294, %v830
        %832 = vmatpush.msra.mxu0 %v831
        %v833 = vand.u32 %v293, 4294901760
        %v834 = vsub.f32 %v293, %v833
        %835 = vmatpush.msra.mxu0 %v834
        %v836 = vand.u32 %v292, 4294901760
        %v837 = vsub.f32 %v292, %v836
        %838 = vmatpush.msra.mxu0 %v837
        %v839 = vand.u32 %v291, 4294901760
        %v840 = vsub.f32 %v291, %v839
        %841 = vmatpush.msra.mxu0 %v840
        %v842 = vand.u32 %v274, 4294901760
        %v843 = vsub.f32 %v274, %v842
        %844 = vmatmul.f32.gmra.mxu0 %v843
        %v845 = vpop.f32.mrf.mxu0
        %v846 = vadd.f32 %v792, %v845
        %847 = vdwg.mxu0
        %v848 = vand.u32 %v306, 4294901760
        %849 = vmatpush.msra.mxu0 %v848
        %v850 = vand.u32 %v305, 4294901760
        %851 = vmatpush.msra.mxu0 %v850
        %v852 = vand.u32 %v304, 4294901760
        %853 = vmatpush.msra.mxu0 %v852
        %v854 = vand.u32 %v303, 4294901760
        %855 = vmatpush.msra.mxu0 %v854
        %v856 = vand.u32 %v302, 4294901760
        %857 = vmatpush.msra.mxu0 %v856
        %v858 = vand.u32 %v301, 4294901760
        %859 = vmatpush.msra.mxu0 %v858
        %v860 = vand.u32 %v300, 4294901760
        %861 = vmatpush.msra.mxu0 %v860
        %v862 = vand.u32 %v299, 4294901760
        %863 = vmatpush.msra.mxu0 %v862
        %v864 = vand.u32 %v298, 4294901760
        %865 = vmatpush.msra.mxu0 %v864
        %v866 = vand.u32 %v297, 4294901760
        %867 = vmatpush.msra.mxu0 %v866
        %v868 = vand.u32 %v296, 4294901760
        %869 = vmatpush.msra.mxu0 %v868
        %v870 = vand.u32 %v295, 4294901760
        %871 = vmatpush.msra.mxu0 %v870
        %v872 = vand.u32 %v294, 4294901760
        %873 = vmatpush.msra.mxu0 %v872
        %v874 = vand.u32 %v293, 4294901760
        %875 = vmatpush.msra.mxu0 %v874
        %v876 = vand.u32 %v292, 4294901760
        %877 = vmatpush.msra.mxu0 %v876
        %v878 = vand.u32 %v291, 4294901760
        %879 = vmatpush.msra.mxu0 %v878
        %v880 = vand.u32 %v274, 4294901760
        %v881 = vsub.f32 %v274, %v880
        %v882 = vand.u32 %v881, 4294901760
        %883 = vmatmul.f32.gmra.mxu0 %v882
        %v884 = vpop.f32.mrf.mxu0
        %v885 = vadd.f32 %v846, %v884
        %886 = vdwg.mxu0
        %v887 = vand.u32 %v306, 4294901760
        %v888 = vsub.f32 %v306, %v887
        %v889 = vand.u32 %v888, 4294901760
        %890 = vmatpush.msra.mxu0 %v889
        %v891 = vand.u32 %v305, 4294901760
        %v892 = vsub.f32 %v305, %v891
        %v893 = vand.u32 %v892, 4294901760
        %894 = vmatpush.msra.mxu0 %v893
        %v895 = vand.u32 %v304, 4294901760
        %v896 = vsub.f32 %v304, %v895
        %v897 = vand.u32 %v896, 4294901760
        %898 = vmatpush.msra.mxu0 %v897
        %v899 = vand.u32 %v303, 4294901760
        %v900 = vsub.f32 %v303, %v899
        %v901 = vand.u32 %v900, 4294901760
        %902 = vmatpush.msra.mxu0 %v901
        %v903 = vand.u32 %v302, 4294901760
        %v904 = vsub.f32 %v302, %v903
        %v905 = vand.u32 %v904, 4294901760
        %906 = vmatpush.msra.mxu0 %v905
        %v907 = vand.u32 %v301, 4294901760
        %v908 = vsub.f32 %v301, %v907
        %v909 = vand.u32 %v908, 4294901760
        %910 = vmatpush.msra.mxu0 %v909
        %v911 = vand.u32 %v300, 4294901760
        %v912 = vsub.f32 %v300, %v911
        %v913 = vand.u32 %v912, 4294901760
        %914 = vmatpush.msra.mxu0 %v913
        %v915 = vand.u32 %v299, 4294901760
        %v916 = vsub.f32 %v299, %v915
        %v917 = vand.u32 %v916, 4294901760
        %918 = vmatpush.msra.mxu0 %v917
        %v919 = vand.u32 %v298, 4294901760
        %v920 = vsub.f32 %v298, %v919
        %v921 = vand.u32 %v920, 4294901760
        %922 = vmatpush.msra.mxu0 %v921
        %v923 = vand.u32 %v297, 4294901760
        %v924 = vsub.f32 %v297, %v923
        %v925 = vand.u32 %v924, 4294901760
        %926 = vmatpush.msra.mxu0 %v925
        %v927 = vand.u32 %v296, 4294901760
        %v928 = vsub.f32 %v296, %v927
        %v929 = vand.u32 %v928, 4294901760
        %930 = vmatpush.msra.mxu0 %v929
        %v931 = vand.u32 %v295, 4294901760
        %v932 = vsub.f32 %v295, %v931
        %v933 = vand.u32 %v932, 4294901760
        %934 = vmatpush.msra.mxu0 %v933
        %v935 = vand.u32 %v294, 4294901760
        %v936 = vsub.f32 %v294, %v935
        %v937 = vand.u32 %v936, 4294901760
        %938 = vmatpush.msra.mxu0 %v937
        %v939 = vand.u32 %v293, 4294901760
        %v940 = vsub.f32 %v293, %v939
        %v941 = vand.u32 %v940, 4294901760
        %942 = vmatpush.msra.mxu0 %v941
        %v943 = vand.u32 %v292, 4294901760
        %v944 = vsub.f32 %v292, %v943
        %v945 = vand.u32 %v944, 4294901760
        %946 = vmatpush.msra.mxu0 %v945
        %v947 = vand.u32 %v291, 4294901760
        %v948 = vsub.f32 %v291, %v947
        %v949 = vand.u32 %v948, 4294901760
        %950 = vmatpush.msra.mxu0 %v949
        %v951 = vand.u32 %v274, 4294901760
        %952 = vmatmul.f32.gmra.mxu0 %v951
        %v953 = vpop.f32.mrf.mxu0
        %v954 = vadd.f32 %v885, %v953
        %955 = vdwg.mxu0
        %v956 = vand.u32 %v306, 4294901760
        %957 = vmatpush.msra.mxu0 %v956
        %v958 = vand.u32 %v305, 4294901760
        %959 = vmatpush.msra.mxu0 %v958
        %v960 = vand.u32 %v304, 4294901760
        %961 = vmatpush.msra.mxu0 %v960
        %v962 = vand.u32 %v303, 4294901760
        %963 = vmatpush.msra.mxu0 %v962
        %v964 = vand.u32 %v302, 4294901760
        %965 = vmatpush.msra.mxu0 %v964
        %v966 = vand.u32 %v301, 4294901760
        %967 = vmatpush.msra.mxu0 %v966
        %v968 = vand.u32 %v300, 4294901760
        %969 = vmatpush.msra.mxu0 %v968
        %v970 = vand.u32 %v299, 4294901760
        %971 = vmatpush.msra.mxu0 %v970
        %v972 = vand.u32 %v298, 4294901760
        %973 = vmatpush.msra.mxu0 %v972
        %v974 = vand.u32 %v297, 4294901760
        %975 = vmatpush.msra.mxu0 %v974
        %v976 = vand.u32 %v296, 4294901760
        %977 = vmatpush.msra.mxu0 %v976
        %v978 = vand.u32 %v295, 4294901760
        %979 = vmatpush.msra.mxu0 %v978
        %v980 = vand.u32 %v294, 4294901760
        %981 = vmatpush.msra.mxu0 %v980
        %v982 = vand.u32 %v293, 4294901760
        %983 = vmatpush.msra.mxu0 %v982
        %v984 = vand.u32 %v292, 4294901760
        %985 = vmatpush.msra.mxu0 %v984
        %v986 = vand.u32 %v291, 4294901760
        %987 = vmatpush.msra.mxu0 %v986
        %v988 = vand.u32 %v274, 4294901760
        %989 = vmatmul.f32.gmra.mxu0 %v988
        %v990 = vpop.f32.mrf.mxu0
        %v991 = vadd.f32 %v954, %v990
        %992 = vdwg.mxu0
        %993 = vst [vmem:[%s270 + $0x8] sm:$0xff] %v991
        %s994 = sand.u32 %s126, 1
        %s995 = scalar_lea.sflag [#allocation4], %s994
        %s996 = sand.u32 %s126, 1
        %s997 = smul.addr %s996, 16
        %s998 = scalar_lea.vmem [#allocation8], %s997
        // Predicated region
        $region49: #{tpu_custom_call.1} parent=35 // pred_check
          %p999 = pneg %p136
        $region50: #{tpu_custom_call.1} parent=35 // pred_check_branch
          %1001 = sbr.rel (%p999) target = $region52
        $region51: #{tpu_custom_call.1} parent=35 // pred_region
          %1003 = vsyncadd %s995, 0
          %s1004 = smul.addr %s24, 2
          %s1005 = smul.addr %s1004, 8
          %s1006 = scalar_lea.hbm %s4, %s1005
          %s1008 = sshll.u32 %s998, 4
          %s1009 = int_to_ptr.vmem [resolvable:$true] %s1008
          %s1010 = sshll.u32 %s1006, 4
          %s1011 = int_to_ptr.hbm [resolvable:$true] %s1010
          %1013 = dma.vmem_to_hbm [thread:$0]  %s1009, 256, %s1011, %s995
        $region52: #{tpu_custom_call.1} parent=35 // pred_fallthru
          _
      $region36: #{tpu_custom_call.1} parent=5 // pred_fallthru
        _
      %p1014 = scmp.le.s32.totalorder 2, %s19
      // Predicated region
      $region53: #{tpu_custom_call.1} parent=5 // pred_check
        %p1015 = pneg %p1014
      $region54: #{tpu_custom_call.1} parent=5 // pred_check_branch
        %1017 = sbr.rel (%p1015) target = $region56
      $region55: #{tpu_custom_call.1} parent=5 // pred_region
        %s1018 = ssub.s32 %s19, 2
        // Predicated region
        $region57: #{tpu_custom_call.1} parent=55 // pred_check
          %p1019 = pneg %p142
        $region58: #{tpu_custom_call.1} parent=55 // pred_check_branch
          %1021 = sbr.rel (%p1019) target = $region60
        $region59: #{tpu_custom_call.1} parent=55 // pred_region
          %s1022 = sand.u32 %s127, 1
          %s1023 = scalar_lea.sflag [#allocation4], %s1022
          %s1024 = sand.u32 %s127, 1
          %s1025 = smul.addr %s1024, 16
          %s1026 = scalar_lea.vmem [#allocation8], %s1025
          %1028 = dma.done %s1023, 256
        $region60: #{tpu_custom_call.1} parent=55 // pred_fallthru
          _
      $region56: #{tpu_custom_call.1} parent=5 // pred_fallthru
        _
    $region6: #{tpu_custom_call.1} parent=1 // loop_footer
      %s23 = sadd.s32 1, %s19
    $region7: #{tpu_custom_call.1} parent=1 // loop_footer_branch
      %18 = sbr.rel target = $region3
    $region8: #{tpu_custom_call.1} parent=1 // loop_exit
      _
    %1029 = vsyncpa [#allocation3], 1
    %s1030 = scalar_lea.sflag [#allocation3], 1
    %1031 = vsyncpa %s1030, 1
    %1032 = vsyncpa [#allocation6], 1
    %s1033 = scalar_lea.sflag [#allocation6], 1
    %1034 = vsyncpa %s1033, 1
    %1035 = vsyncpa [#allocation4], 1
    %s1036 = scalar_lea.sflag [#allocation4], 1
    %1037 = vsyncpa %s1036, 1

</llo_original>
